<compile_context>
chip_gen: v7x
topology: tpu7x:2x2x1
jax: 0.10.0
libtpu: 0.0.40
codegen_flags: <defaults>
</compile_context>

<pallas_src>
import functools

import jax
import jax.numpy as jnp
from jax.experimental import pallas as pl
from jax.experimental.pallas import tpu as pltpu


def _bwd_seq_transform_kernel(x_ref, w_ref, p_ref, o_ref):
    # x_ref: (TM, KC)   flattened input windows (native dtype)
    # w_ref: (KC, C)    flattened conv weight   (native dtype)
    # p_ref: (3, C)     [conv bias; ln gamma; ln beta]  (f32)
    # o_ref: (TM, C)    output
    # "Conv" as an MXU matmul with f32 accumulation.
    y = jnp.dot(x_ref[...], w_ref[...], preferred_element_type=jnp.float32)
    y = y + p_ref[0:1, :]

    # LayerNorm over channels — single pass: sum and sum-of-squares.
    inv_c = 1.0 / y.shape[-1]
    s1 = jnp.sum(y, axis=-1, keepdims=True)
    s2 = jnp.sum(y * y, axis=-1, keepdims=True)
    mean = s1 * inv_c
    var = s2 * inv_c - mean * mean
    y_n = (y - mean) * jax.lax.rsqrt(var + 1e-5)
    y_n = y_n * p_ref[1:2, :] + p_ref[2:3, :]

    # SiLU (sigmoid on the EUP slot).
    o_ref[...] = (y_n * jax.nn.sigmoid(y_n)).astype(o_ref.dtype)


def _round_up(n, m):
    return ((n + m - 1) // m) * m


def _pick_tm(M, KC, C_out, bytes_per_elem, vmem_budget_bytes=12 << 20):
    """Largest power-of-two row tile whose double-buffered working set fits."""
    tm = 8192
    while tm > 8:
        live = 2 * tm * (KC + C_out) * bytes_per_elem + 2 * KC * C_out * bytes_per_elem
        if live <= vmem_budget_bytes:
            break
        tm //= 2
    # Don't exceed the (8-aligned) problem size for small inputs.
    return max(8, min(tm, _round_up(M, 8)))


@functools.partial(jax.jit, static_argnames=("kernel_size",))
def backward_sequence_transform(x, conv_w, conv_b, ln_w, ln_b, kernel_size):
    """x: (B, L, C_in). Returns (B, L // kernel_size, C_out)."""
    B, L, C_in = x.shape
    C_out = conv_w.shape[0]
    K = kernel_size
    assert L % K == 0, "sequence length must be divisible by conv kernel_size"
    T = L // K
    M = B * T
    KC = K * C_in

    # (C_out, C_in, K) -> (K, C_in, C_out) -> (K*C_in, C_out)
    w_flat = jnp.transpose(conv_w, (2, 1, 0)).reshape(KC, C_out)
    # Pack the three per-channel vectors into one resident f32 block.
    params = jnp.stack([conv_b, ln_w, ln_b]).astype(jnp.float32)  # (3, C_out)

    # Non-overlapping windows: (B, L, C_in) -> (B*T, K*C_in). Free (contiguous).
    x_flat = x.reshape(M, KC)

    bytes_per_elem = jnp.dtype(x.dtype).itemsize
    TM = _pick_tm(M, KC, C_out, bytes_per_elem)
    grid = (pl.cdiv(M, TM),)

    cost = pl.CostEstimate(
        flops=2 * M * KC * C_out + 8 * M * C_out,
        transcendentals=M * C_out,
        bytes_accessed=(M * KC + KC * C_out + M * C_out) * bytes_per_elem,
    )

    out_flat = pl.pallas_call(
        _bwd_seq_transform_kernel,
        out_shape=jax.ShapeDtypeStruct((M, C_out), x.dtype),
        grid=grid,
        in_specs=[
            pl.BlockSpec((TM, KC), lambda i: (i, 0)),        # tiled over rows
            pl.BlockSpec((KC, C_out), lambda i: (0, 0)),     # resident weight
            pl.BlockSpec((3, C_out), lambda i: (0, 0)),      # resident bias/gamma/beta
        ],
        out_specs=pl.BlockSpec((TM, C_out), lambda i: (i, 0)),
        compiler_params=pltpu.CompilerParams(
            # Row tiles are independent -> shard across v7x's 2 TCs.
            dimension_semantics=("parallel",)),
        cost_estimate=cost,
    )(x_flat, w_flat, params)

    return out_flat.reshape(B, T, C_out)


def _reference(x, conv_w, conv_b, ln_w, ln_b, K):
    # Pure-JAX reference of the PyTorch forward pass (sanity check).
    B, L, C_in = x.shape
    T = L // K
    xw = x.reshape(B, T, K, C_in)
    y = jnp.einsum("btki,oik->bto", xw, conv_w) + conv_b
    mean = jnp.mean(y, axis=-1, keepdims=True)
    var = jnp.mean(jnp.square(y - mean), axis=-1, keepdims=True)
    yn = (y - mean) / jnp.sqrt(var + 1e-5) * ln_w + ln_b
    return yn * jax.nn.sigmoid(yn)


if __name__ == "__main__":
    # Small shapes consistent with the module:
    #   in_embed_dim=32, out_embed_dim=64, old_patch_size=2, new_patch_size=4
    #   => kernel_size = stride = (4 // 2) ** 2 = 4
    B, L = 2, 16
    in_embed_dim, out_embed_dim = 32, 64
    old_patch_size, new_patch_size = 2, 4
    K = (new_patch_size // old_patch_size) ** 2

    key = jax.random.PRNGKey(0)
    kx, kw, kb = jax.random.split(key, 3)

    x = jax.random.normal(kx, (B, L, in_embed_dim), dtype=jnp.float32)

    # Deterministic synthetic params (PyTorch default LN: gamma=1, beta=0).
    conv_w = 0.1 * jax.random.normal(kw, (out_embed_dim, in_embed_dim, K),
                                     dtype=jnp.float32)
    conv_b = 0.05 * jax.random.normal(kb, (out_embed_dim,), dtype=jnp.float32)
    ln_w = jnp.ones((out_embed_dim,), dtype=jnp.float32)
    ln_b = jnp.zeros((out_embed_dim,), dtype=jnp.float32)

    out = backward_sequence_transform(x, conv_w, conv_b, ln_w, ln_b, K)
    out = jax.block_until_ready(out)

    ref = _reference(x, conv_w, conv_b, ln_w, ln_b, K)
    assert out.shape == (B, L // K, out_embed_dim)
    assert jnp.allclose(out, ref, atol=1e-4, rtol=1e-4), (
        float(jnp.max(jnp.abs(out - ref))))

    print("KERNEL_OK")
</pallas_src>

<mosaic_0001>
module attributes {stable_mosaic.version = 11 : i64} {
  func.func @_bwd_seq_transform_kernel(%arg0: i32, %arg1: memref<8x128xf32, #tpu.memory_space<vmem>>, %arg2: memref<128x64xf32, #tpu.memory_space<vmem>>, %arg3: memref<3x64xf32, #tpu.memory_space<vmem>>, %arg4: memref<8x64xf32, #tpu.memory_space<vmem>>) attributes {dimension_semantics = [#tpu.dimension_semantics<parallel>], iteration_bounds = array<i64: 1>, scalar_prefetch = 0 : i64, scratch_operands = 0 : i64, tpu.core_type = #tpu.core_type<tc>, window_params = [{transform_indices = @transform_0, window_bounds = array<i64: 8, 128>}, {pipeline_mode = #tpu.pipeline_mode<synchronous>, transform_indices = @transform_1, window_bounds = array<i64: 128, 64>}, {pipeline_mode = #tpu.pipeline_mode<synchronous>, transform_indices = @transform_2, window_bounds = array<i64: 3, 64>}, {transform_indices = @transform_3, window_bounds = array<i64: 8, 64>}]} {
    %c0 = arith.constant 0 : index
    %c0_0 = arith.constant 0 : index
    %0 = vector.load %arg1[%c0, %c0_0] : memref<8x128xf32, #tpu.memory_space<vmem>>, vector<8x128xf32>
    %c0_1 = arith.constant 0 : index
    %c0_2 = arith.constant 0 : index
    %1 = vector.load %arg2[%c0_1, %c0_2] : memref<128x64xf32, #tpu.memory_space<vmem>>, vector<128x64xf32>
    %cst = arith.constant dense<0.000000e+00> : vector<8x64xf32>
    %2 = tpu.matmul %0, %1, %cst {dimension_numbers = #tpu.dot_dimension_numbers<[1], [0], [0], [1], [0, 0, 1, 1], [], []>} : vector<8x128xf32>, vector<128x64xf32>, vector<8x64xf32> -> vector<8x64xf32>
    %c0_3 = arith.constant 0 : index
    %c0_4 = arith.constant 0 : index
    %3 = vector.load %arg3[%c0_3, %c0_4] : memref<3x64xf32, #tpu.memory_space<vmem>>, vector<1x64xf32>
    %4 = vector.broadcast %3 : vector<1x64xf32> to vector<8x64xf32>
    %5 = arith.addf %2, %4 : vector<8x64xf32>
    %cst_5 = arith.constant dense<0.000000e+00> : vector<8xf32>
    %6 = vector.multi_reduction <add>, %5, %cst_5 [1] : vector<8x64xf32> to vector<8xf32>
    %7 = vector.shape_cast %6 : vector<8xf32> to vector<8x1xf32>
    %8 = arith.mulf %5, %5 : vector<8x64xf32>
    %cst_6 = arith.constant dense<0.000000e+00> : vector<8xf32>
    %9 = vector.multi_reduction <add>, %8, %cst_6 [1] : vector<8x64xf32> to vector<8xf32>
    %10 = vector.shape_cast %9 : vector<8xf32> to vector<8x1xf32>
    %cst_7 = arith.constant 1.562500e-02 : f32
    %11 = vector.broadcast %cst_7 : f32 to vector<8x1xf32>
    %12 = arith.mulf %7, %11 : vector<8x1xf32>
    %cst_8 = arith.constant 1.562500e-02 : f32
    %13 = vector.broadcast %cst_8 : f32 to vector<8x1xf32>
    %14 = arith.mulf %10, %13 : vector<8x1xf32>
    %15 = arith.mulf %12, %12 : vector<8x1xf32>
    %16 = arith.subf %14, %15 : vector<8x1xf32>
    %17 = vector.broadcast %12 : vector<8x1xf32> to vector<8x64xf32>
    %18 = arith.subf %5, %17 : vector<8x64xf32>
    %cst_9 = arith.constant 9.99999974E-6 : f32
    %19 = vector.broadcast %cst_9 : f32 to vector<8x1xf32>
    %20 = arith.addf %16, %19 : vector<8x1xf32>
    %21 = math.rsqrt %20 : vector<8x1xf32>
    %22 = vector.broadcast %21 : vector<8x1xf32> to vector<8x64xf32>
    %23 = arith.mulf %18, %22 : vector<8x64xf32>
    %c1 = arith.constant 1 : index
    %c0_10 = arith.constant 0 : index
    %24 = vector.load %arg3[%c1, %c0_10] : memref<3x64xf32, #tpu.memory_space<vmem>>, vector<1x64xf32>
    %25 = vector.broadcast %24 : vector<1x64xf32> to vector<8x64xf32>
    %26 = arith.mulf %23, %25 : vector<8x64xf32>
    %c2 = arith.constant 2 : index
    %c0_11 = arith.constant 0 : index
    %27 = vector.load %arg3[%c2, %c0_11] : memref<3x64xf32, #tpu.memory_space<vmem>>, vector<1x64xf32>
    %28 = vector.broadcast %27 : vector<1x64xf32> to vector<8x64xf32>
    %29 = arith.addf %26, %28 : vector<8x64xf32>
    %30 = arith.negf %29 : vector<8x64xf32>
    %31 = math.exp %30 : vector<8x64xf32>
    %cst_12 = arith.constant 1.000000e+00 : f32
    %32 = vector.broadcast %cst_12 : f32 to vector<8x64xf32>
    %33 = arith.addf %32, %31 : vector<8x64xf32>
    %34 = arith.divf %32, %33 : vector<8x64xf32>
    %35 = arith.mulf %29, %34 : vector<8x64xf32>
    %c0_13 = arith.constant 0 : index
    %c0_14 = arith.constant 0 : index
    %36 = vector.load %arg4[%c0_13, %c0_14] : memref<8x64xf32, #tpu.memory_space<vmem>>, vector<8x64xf32>
    tpu.vector_store %arg4[%c0_13, %c0_14], %35 {strides = array<i32>} : memref<8x64xf32, #tpu.memory_space<vmem>>, vector<8x64xf32>,
    return
  }
  func.func @transform_0(%arg0: i32) -> (i32, i32) {
    %c0_i32 = arith.constant 0 : i32
    %c0_i32_0 = arith.constant 0 : i32
    return %arg0, %c0_i32 : i32, i32
  }
  func.func @transform_1(%arg0: i32) -> (i32, i32) {
    %c0_i32 = arith.constant 0 : i32
    %c0_i32_0 = arith.constant 0 : i32
    %c0_i32_1 = arith.constant 0 : i32
    return %c0_i32, %c0_i32_0 : i32, i32
  }
  func.func @transform_2(%arg0: i32) -> (i32, i32) {
    %c0_i32 = arith.constant 0 : i32
    %c0_i32_0 = arith.constant 0 : i32
    %c0_i32_1 = arith.constant 0 : i32
    return %c0_i32, %c0_i32_0 : i32, i32
  }
  func.func @transform_3(%arg0: i32) -> (i32, i32) {
    %c0_i32 = arith.constant 0 : i32
    %c0_i32_0 = arith.constant 0 : i32
    return %arg0, %c0_i32 : i32, i32
  }
}

</mosaic_0001>

<llo_original>
// kernel: backward_sequence_transform.1
$region0: #{backward_sequence_transform.1}
  #allocation0 [shape = 'u32[]', space=smem, size = 0x4, offset = 0x4, fixed_abs, tag = 'smem constant byte address 0x4 - core index']
  #allocation1 [shape = 'u32[144,128]{1,0:T(1,128)}', space=vmem, size = 0x12000, scoped, tag = 'internal scratch']
  %s0 = inlined_call_operand.vmem [shape: f32[8,128], index: 0, kind: input, shape index: {}]
  %s1 = inlined_call_operand.vmem [shape: f32[128,64], index: 1, kind: input, shape index: {}]
  %s2 = inlined_call_operand.vmem [shape: f32[3,64], index: 2, kind: input, shape index: {}]
  %s3 = inlined_call_operand.hbm [shape: f32[8,64], index: 3, kind: output, shape index: {}]
  %s4 = sld [smem:[#allocation0]]
  $region22: #{backward_sequence_transform.1} parent=0
    _
  %s6 = ssub.s32 1, %s4
  %s7 = scalar_select 0, %s6, %s4
  $region1: #{backward_sequence_transform.1} parent=0
    #allocation2 [shape = 'u8[4096]{0}', space=vmem, size = 0x1000, scoped, tag = 'output window, operand 0, single buffered']
    #allocation3 [shape = 's32[1]{0}', space=sflag, size = 0x4, scoped, tag = 'scoped memory for backward_sequence_transform.1']
    %8 = vsyncpa [#allocation3], 0
    // Predicated region
    $region2: #{backward_sequence_transform.1} parent=1 // pred_check
      _
    $region3: #{backward_sequence_transform.1} parent=1 // pred_check_branch
      %10 = sbr.rel (0) target = $region5
    $region4: #{backward_sequence_transform.1} parent=1 // pred_region
      _
    $region5: #{backward_sequence_transform.1} parent=1 // pred_fallthru
      _
    // Predicated region
    $region6: #{backward_sequence_transform.1} parent=1 // pred_check
      _
    $region7: #{backward_sequence_transform.1} parent=1 // pred_check_branch
      %12 = sbr.rel (0) target = $region9
    $region8: #{backward_sequence_transform.1} parent=1 // pred_region
      _
    $region9: #{backward_sequence_transform.1} parent=1 // pred_fallthru
      _
    // Predicated region
    $region10: #{backward_sequence_transform.1} parent=1 // pred_check
      _
    $region11: #{backward_sequence_transform.1} parent=1 // pred_check_branch
      %14 = sbr.rel (0) target = $region13
    $region12: #{backward_sequence_transform.1} parent=1 // pred_region
      _
    $region13: #{backward_sequence_transform.1} parent=1 // pred_fallthru
      _
    %v15 = vld [vmem:[%s0] sm:$0xff]
    %v16 = vld [vmem:[%s1] sm:$0xff]
    %v17 = vld [vmem:[%s1 + $0x8] sm:$0xff]
    %v18 = vld [vmem:[%s1 + $0x10] sm:$0xff]
    %v19 = vld [vmem:[%s1 + $0x18] sm:$0xff]
    %v20 = vld [vmem:[%s1 + $0x20] sm:$0xff]
    %v21 = vld [vmem:[%s1 + $0x28] sm:$0xff]
    %v22 = vld [vmem:[%s1 + $0x30] sm:$0xff]
    %v23 = vld [vmem:[%s1 + $0x38] sm:$0xff]
    %v24 = vld [vmem:[%s1 + $0x40] sm:$0xff]
    %v25 = vld [vmem:[%s1 + $0x48] sm:$0xff]
    %v26 = vld [vmem:[%s1 + $0x50] sm:$0xff]
    %v27 = vld [vmem:[%s1 + $0x58] sm:$0xff]
    %v28 = vld [vmem:[%s1 + $0x60] sm:$0xff]
    %v29 = vld [vmem:[%s1 + $0x68] sm:$0xff]
    %v30 = vld [vmem:[%s1 + $0x70] sm:$0xff]
    %v31 = vld [vmem:[%s1 + $0x78] sm:$0xff]
    %v32 = vld [vmem:[%s2] sm:$0x1]
    %v33 = vlaneseq
    %v34 = vshrl.u32 %v33, 7
    %v35 = vsub.s32 0, %v34
    %v36 = vrot.slane %v32, %v35
    %37 = vmatprep.subr.mxu0 0.0
    %38 = vmatpush1.msra.mxu0 %v16
    %39 = vmatprep.subr.mxu0 0.0
    %40 = vmatpush1.msra.mxu0 %v17
    %41 = vmatprep.subr.mxu0 0.0
    %42 = vmatpush1.msra.mxu0 %v18
    %43 = vmatprep.subr.mxu0 0.0
    %44 = vmatpush1.msra.mxu0 %v19
    %45 = vmatprep.subr.mxu0 0.0
    %46 = vmatpush1.msra.mxu0 %v20
    %47 = vmatprep.subr.mxu0 0.0
    %48 = vmatpush1.msra.mxu0 %v21
    %49 = vmatprep.subr.mxu0 0.0
    %50 = vmatpush1.msra.mxu0 %v22
    %51 = vmatprep.subr.mxu0 0.0
    %52 = vmatpush1.msra.mxu0 %v23
    %53 = vmatprep.subr.mxu0 0.0
    %54 = vmatpush1.msra.mxu0 %v24
    %55 = vmatprep.subr.mxu0 0.0
    %56 = vmatpush1.msra.mxu0 %v25
    %57 = vmatprep.subr.mxu0 0.0
    %58 = vmatpush1.msra.mxu0 %v26
    %59 = vmatprep.subr.mxu0 0.0
    %60 = vmatpush1.msra.mxu0 %v27
    %61 = vmatprep.subr.mxu0 0.0
    %62 = vmatpush1.msra.mxu0 %v28
    %63 = vmatprep.subr.mxu0 0.0
    %64 = vmatpush1.msra.mxu0 %v29
    %65 = vmatprep.subr.mxu0 0.0
    %66 = vmatpush1.msra.mxu0 %v30
    %67 = vmatprep.subr.mxu0 0.0
    %68 = vmatpush1.msra.mxu0 %v31
    %69 = vmatprep.subr.mxu0 0.0
    %70 = vmatpush1.msra.mxu0 0.0
    %71 = vmatprep.subr.mxu0 0.0
    %72 = vmatpush1.msra.mxu0 0.0
    %73 = vmatprep.subr.mxu0 0.0
    %74 = vmatpush1.msra.mxu0 0.0
    %75 = vmatprep.subr.mxu0 0.0
    %76 = vmatpush1.msra.mxu0 0.0
    %77 = vmatprep.subr.mxu0 0.0
    %78 = vmatpush1.msra.mxu0 0.0
    %79 = vmatprep.subr.mxu0 0.0
    %80 = vmatpush1.msra.mxu0 0.0
    %81 = vmatprep.subr.mxu0 0.0
    %82 = vmatpush1.msra.mxu0 0.0
    %83 = vmatprep.subr.mxu0 0.0
    %84 = vmatpush1.msra.mxu0 0.0
    %85 = vmatprep.subr.mxu0 0.0
    %86 = vmatpush1.msra.mxu0 0.0
    %87 = vmatprep.subr.mxu0 0.0
    %88 = vmatpush1.msra.mxu0 0.0
    %89 = vmatprep.subr.mxu0 0.0
    %90 = vmatpush1.msra.mxu0 0.0
    %91 = vmatprep.subr.mxu0 0.0
    %92 = vmatpush1.msra.mxu0 0.0
    %93 = vmatprep.subr.mxu0 0.0
    %94 = vmatpush1.msra.mxu0 0.0
    %95 = vmatprep.subr.mxu0 0.0
    %96 = vmatpush1.msra.mxu0 0.0
    %97 = vmatprep.subr.mxu0 0.0
    %98 = vmatpush1.msra.mxu0 0.0
    %99 = vmatprep.subr.mxu0 0.0
    %100 = vmatpush1.msra.mxu0 0.0
    %101 = vmatprep.mubr.f32.mxu0 0.0
    %102 = vmatmul.mubr.f32.gmra.mrb[0].mxu0 %v15
    %v103 = vpop.f32.mrb[0].mxu0
    %v104 = vadd.f32 %v36, %v103
    %v105 = vpop.f32.mrb[0].mxu0
    %106 = vdwg.mxu0
    %vm107 = vcmask 523264
    %v108 = vsel %vm107, %v104, 0.0
    %109 = vadd.xlane.f32.xlu0 %v108
    %v110 = vpop.xlane.xlu0 %109
    %v111 = vmul.f32 %v104, %v104
    %v112 = vsel %vm107, %v111, 0.0
    %113 = vadd.xlane.f32.xlu0 %v112
    %v114 = vpop.xlane.xlu0 %113
    %v115 = vmul.f32 %v110, 0.015625
    %v116 = vmul.f32 %v114, 0.015625
    %v117 = vmul.f32 %v115, %v115
    %v118 = vsub.f32 %v116, %v117
    %v119 = vsub.f32 %v104, %v115
    %v120 = vadd.f32 %v118, 1e-05
    %v121 = vrsqrt.pop %v120
    %v122 = vmul.f32 %v119, %v121
    %v123 = vld [vmem:[%s2 + $0x1] sm:$0x1]
    %v124 = vlaneseq
    %v125 = vshrl.u32 %v124, 7
    %v126 = vsub.s32 0, %v125
    %v127 = vrot.slane %v123, %v126
    %v128 = vmul.f32 %v122, %v127
    %v129 = vld [vmem:[%s2 + $0x2] sm:$0x1]
    %v130 = vlaneseq
    %v131 = vshrl.u32 %v130, 7
    %v132 = vsub.s32 0, %v131
    %v133 = vrot.slane %v129, %v132
    %v134 = vadd.f32 %v128, %v133
    %v135 = vxor.u32 %v134, 2147483648
    %v136 = vmul.f32 %v135, 1.442695
    %v137 = vpow.pop %v136
    %v138 = vadd.f32 %v137, 1.0
    %v139 = vrcp.pop %v138
    %v140 = vmul.f32 1.0, %v139
    %v141 = vmul.f32 %v134, %v140
    %142 = vst.msk [vmem:[#allocation2] sm:$0xff] %vm107, %v141
    // Predicated region
    $region14: #{backward_sequence_transform.1} parent=1 // pred_check
      _
    $region15: #{backward_sequence_transform.1} parent=1 // pred_check_branch
      %144 = sbr.rel (0) target = $region17
    $region16: #{backward_sequence_transform.1} parent=1 // pred_region
      %s146 = ssub.s32 128, 128
      %147 = vsyncadd [#allocation3], %s146
      %s149 = sshll.u32 [#allocation2], 4
      %s150 = int_to_ptr.vmem [resolvable:$true] %s149
      %152 = dma.vmem_to_hbm [thread:$0]  %s150, 128, %s3, [#allocation3]
    $region17: #{backward_sequence_transform.1} parent=1 // pred_fallthru
      _
    // Predicated region
    $region18: #{backward_sequence_transform.1} parent=1 // pred_check
      _
    $region19: #{backward_sequence_transform.1} parent=1 // pred_check_branch
      %154 = sbr.rel (0) target = $region21
    $region20: #{backward_sequence_transform.1} parent=1 // pred_region
      %155 = dma.done [#allocation3], 128
    $region21: #{backward_sequence_transform.1} parent=1 // pred_fallthru
      _
    %156 = vsyncpa [#allocation3], 1

</llo_original>
